<compile_context>
chip_gen: v6e
topology: v6e:2x2x1
jax: 0.10.0
libtpu: 0.0.40
codegen_flags: <defaults>
</compile_context>

<pallas_src>
import math
import functools

import jax
import jax.numpy as jnp
from jax import lax
from jax.experimental import pallas as pl
from jax.experimental.pallas import tpu as pltpu

PAD_IDX = 0               # sp_vi.pad_id() stand-in
VOCAB_SIZE = 64
EMB_SIZE = 128            # lane-aligned embedding width
T_TILE_DEFAULT = 1024     # tokens per grid step (per perf review: hit HBM-store roofline)
ONE_HOT_MAX_VOCAB = 512   # gate the one-hot MXU path to small vocabularies


def _round_up(x: int, m: int) -> int:
    return ((x + m - 1) // m) * m


def _split_f32_to_3bf16(x: jax.Array) -> jax.Array:
    """Exact 3-term bf16 decomposition of an f32 array: hi + mid + lo == x (to ~1 ulp)."""
    hi = x.astype(jnp.bfloat16)
    r1 = x - hi.astype(jnp.float32)
    mid = r1.astype(jnp.bfloat16)
    r2 = r1 - mid.astype(jnp.float32)
    lo = r2.astype(jnp.bfloat16)
    return jnp.stack([hi, mid, lo])          # (3, vocab, emb) bf16


# --------------------------------------------------------------------------- #
# Fast path: small vocab, VMEM-resident table, one-hot gather on the MXU.
# --------------------------------------------------------------------------- #
def _one_hot_kernel(ids_ref, tab_ref, out_ref, *, vocab):
    # ids_ref: (T, 1) int32 token ids for this tile (VMEM)
    # tab_ref: (3, vocab, emb) bf16 split of the *scaled* table, VMEM-resident
    # out_ref: (T, emb) f32 scaled embedding rows (lane-dense stores)
    ids = ids_ref[...]                                                  # (T, 1)
    col = lax.broadcasted_iota(jnp.int32, (ids.shape[0], vocab), 1)     # (T, V)
    # Exact {0,1} one-hot (representable in bf16, so each MXU pass is exact).
    # Out-of-range ids select nothing -> all-zero row (documented deviation from
    # nn.Embedding, which would raise).
    one_hot = jnp.where(ids == col, 1.0, 0.0).astype(jnp.bfloat16)      # (T, V)
    # Three 1-pass bf16 matmuls (f32 accumulate) == exact f32 gather of table*scale.
    acc = jnp.dot(one_hot, tab_ref[0], preferred_element_type=jnp.float32)
    acc = acc + jnp.dot(one_hot, tab_ref[1], preferred_element_type=jnp.float32)
    acc = acc + jnp.dot(one_hot, tab_ref[2], preferred_element_type=jnp.float32)
    out_ref[...] = acc.astype(out_ref.dtype)


def _token_embedding_one_hot(flat_ids, n_tok, table, scale, t_tile, vmem_limit, out_dtype):
    vocab, emb = table.shape
    vocab_pad = _round_up(vocab, 8)

    # Fold sqrt(emb) into the table ONCE (wrapper-side, tiny for small vocab),
    # then split into the exact bf16 triple used by the kernel.
    tab = table.astype(jnp.float32) * jnp.float32(scale)
    if vocab_pad != vocab:
        tab = jnp.pad(tab, ((0, vocab_pad - vocab), (0, 0)))   # padded rows never selected
    tab3 = _split_f32_to_3bf16(tab)                            # (3, Vp, E) bf16

    n_pad = _round_up(n_tok, t_tile)
    if n_pad != n_tok:
        flat_ids = jnp.pad(flat_ids, (0, n_pad - n_tok), constant_values=PAD_IDX)
    ids2d = flat_ids.reshape(n_pad, 1)

    kernel = functools.partial(_one_hot_kernel, vocab=vocab_pad)

    out_flat = pl.pallas_call(
        kernel,
        out_shape=jax.ShapeDtypeStruct((n_pad, emb), out_dtype),
        grid_spec=pltpu.PrefetchScalarGridSpec(
            num_scalar_prefetch=0,
            grid=(n_pad // t_tile,),
            in_specs=[
                # Per-tile token ids (lane dim 1 == full array dim -> legal block).
                pl.BlockSpec((t_tile, 1), lambda i: (i, 0)),
                # Full split table, constant block index -> DMA'd once, stays in VMEM.
                pl.BlockSpec((3, vocab_pad, emb), lambda i: (0, 0, 0)),
            ],
            out_specs=pl.BlockSpec((t_tile, emb), lambda i: (i, 0)),
        ),
        compiler_params=pltpu.CompilerParams(
            dimension_semantics=("parallel",),     # independent tiles -> v7x dual-TC split
            vmem_limit_bytes=vmem_limit,
        ),
    )(ids2d, tab3)

    return out_flat[:n_tok]


# --------------------------------------------------------------------------- #
# Fallback path: large vocab.  Table stays in HBM; scalar-prefetched ids drive a
# data-dependent index_map that DMAs one embedding row per grid step.
# --------------------------------------------------------------------------- #
def _row_gather_kernel(ids_smem, row_ref, out_ref, *, scale):
    # ids_smem: (n_tok,) int32 in SMEM (scalar prefetch; consumed by the index_maps)
    # row_ref:  (1, 1, emb) gathered table row
    # out_ref:  (1, 1, emb) output row
    del ids_smem
    out_ref[...] = row_ref[...] * scale


def _token_embedding_row_gather(flat_ids, n_tok, table, scale, out_dtype):
    vocab, emb = table.shape
    tab3d = table.reshape(vocab, 1, emb)   # (V, 1, E): blocks (1, 1, E) keep last-two dims full

    # TODO(synk): per-token grid steps cost ~0.35 us each; for large batches switch
    # to a batched manual-DMA gather (memory_space=pl.ANY table + double-buffered
    # VMEM scratch) to amortize overhead while keeping the table out of VMEM.
    out = pl.pallas_call(
        functools.partial(_row_gather_kernel, scale=scale),
        out_shape=jax.ShapeDtypeStruct((n_tok, 1, emb), out_dtype),
        grid_spec=pltpu.PrefetchScalarGridSpec(
            num_scalar_prefetch=1,
            grid=(n_tok,),
            in_specs=[
                # Data-dependent row gather: block index comes from the prefetched ids.
                pl.BlockSpec((1, 1, emb), lambda i, ids: (ids[i], 0, 0)),
            ],
            out_specs=pl.BlockSpec((1, 1, emb), lambda i, ids: (i, 0, 0)),
        ),
        compiler_params=pltpu.CompilerParams(
            dimension_semantics=("parallel",),
        ),
    )(flat_ids, tab3d)

    return out.reshape(n_tok, emb)


# --------------------------------------------------------------------------- #
# Public wrapper: nn.Embedding(tokens) * sqrt(emb_size)
# --------------------------------------------------------------------------- #
def token_embedding(tokens: jax.Array, table: jax.Array,
                    *, t_tile: int = T_TILE_DEFAULT) -> jax.Array:
    vocab, emb = table.shape
    scale = math.sqrt(emb)
    out_dtype = table.dtype

    flat = tokens.reshape(-1).astype(jnp.int32)
    n_tok = flat.shape[0]

    # Generation-aware VMEM budget: request only what we need, leave ~12 MiB free
    # for Mosaic internal scratch / neighboring ops (v7x has only 64 MiB per TC;
    # v5e/v6e have 128 MiB, so no hard 64 MiB cap either).
    try:
        vmem_cap = int(pltpu.get_tpu_info().vmem_capacity_bytes)
    except Exception:  # pragma: no cover - conservative default (v7x per-TC VMEM)
        vmem_cap = 64 << 20
    usable_vmem = max(vmem_cap - (12 << 20), 8 << 20)

    # Token tile: multiple of 8 sublanes, capped by the token count, and small
    # enough that the grid has >= 2 steps so both v7x TensorCores get work.
    t = max(8, min(int(t_tile), _round_up(n_tok, 8)))
    t = min(t, max(8, _round_up(pl.cdiv(n_tok, 2), 8)))

    vocab_pad = _round_up(vocab, 8)
    table_bytes = 3 * vocab_pad * emb * 2          # resident split-bf16 table
    tile_bytes = t * (emb * 4 + 4)                 # one out tile + one ids tile
    need = 2 * table_bytes + 2 * tile_bytes + (8 << 20)   # pipeline buffers + headroom
    vmem_limit = int(min(need, usable_vmem))

    if vocab <= ONE_HOT_MAX_VOCAB and need <= usable_vmem:
        out_flat = _token_embedding_one_hot(flat, n_tok, table, scale, t,
                                            vmem_limit, out_dtype)
    else:
        out_flat = _token_embedding_row_gather(flat, n_tok, table, scale, out_dtype)

    return out_flat.reshape(*tokens.shape, emb)


def _init_embedding_table(key, vocab_size, emb_size, pad_idx):
    # Deterministic synthetic init (nn.Embedding default is N(0,1)); zero the
    # padding row exactly as nn.Embedding(padding_idx=...) does at init.
    table = jax.random.normal(key, (vocab_size, emb_size), dtype=jnp.float32)
    table = table.at[pad_idx].set(0.0)
    return table


if __name__ == "__main__":
    key = jax.random.PRNGKey(0)
    k_tab, k_tok = jax.random.split(key)

    B, S = 2, 8
    table = _init_embedding_table(k_tab, VOCAB_SIZE, EMB_SIZE, PAD_IDX)
    tokens = jax.random.randint(k_tok, (B, S), 0, VOCAB_SIZE, dtype=jnp.int32)
    # Sprinkle some padding tokens to exercise the zeroed padding row.
    tokens = tokens.at[0, -2:].set(PAD_IDX)

    out = token_embedding(tokens, table)
    out = jax.block_until_ready(out)

    # Reference check (plain JAX).
    ref = jnp.take(table, tokens, axis=0) * jnp.float32(math.sqrt(EMB_SIZE))
    assert out.shape == (B, S, EMB_SIZE)
    assert out.dtype == jnp.float32
    assert jnp.allclose(out, ref, atol=1e-4, rtol=1e-5)

    print("KERNEL_OK")
</pallas_src>

<mosaic_0001>
module attributes {stable_mosaic.version = 11 : i64} {
  func.func @_one_hot_kernel(%arg0: i32, %arg1: memref<8x1xi32, #tpu.memory_space<vmem>>, %arg2: memref<3x64x128xbf16, #tpu.memory_space<vmem>>, %arg3: memref<8x128xf32, #tpu.memory_space<vmem>>) attributes {dimension_semantics = [#tpu.dimension_semantics<parallel>], iteration_bounds = array<i64: 2>, scalar_prefetch = 0 : i64, scratch_operands = 0 : i64, tpu.core_type = #tpu.core_type<tc>, window_params = [{transform_indices = @transform_0, window_bounds = array<i64: 8, 1>}, {pipeline_mode = #tpu.pipeline_mode<synchronous>, transform_indices = @transform_1, window_bounds = array<i64: 3, 64, 128>}, {transform_indices = @transform_2, window_bounds = array<i64: 8, 128>}]} {
    %c0 = arith.constant 0 : index
    %c0_0 = arith.constant 0 : index
    %0 = vector.load %arg1[%c0, %c0_0] : memref<8x1xi32, #tpu.memory_space<vmem>>, vector<8x1xi32>
    %1 = tpu.iota {dimensions = array<i32: 1>} : vector<8x64xi32>
    %2 = vector.broadcast %0 : vector<8x1xi32> to vector<8x64xi32>
    %3 = arith.cmpi eq, %2, %1 : vector<8x64xi32>
    %cst = arith.constant 1.000000e+00 : f32
    %cst_1 = arith.constant 0.000000e+00 : f32
    %4 = vector.broadcast %cst : f32 to vector<8x64xf32>
    %5 = vector.broadcast %cst_1 : f32 to vector<8x64xf32>
    %6 = arith.select %3, %4, %5 : vector<8x64xi1>, vector<8x64xf32>
    %7 = arith.truncf %6 : vector<8x64xf32> to vector<8x64xbf16>
    %c0_2 = arith.constant 0 : index
    %c0_3 = arith.constant 0 : index
    %c0_4 = arith.constant 0 : index
    %8 = vector.load %arg2[%c0_2, %c0_3, %c0_4] : memref<3x64x128xbf16, #tpu.memory_space<vmem>>, vector<1x64x128xbf16>
    %9 = vector.shape_cast %8 : vector<1x64x128xbf16> to vector<64x128xbf16>
    %cst_5 = arith.constant dense<0.000000e+00> : vector<8x128xf32>
    %10 = tpu.matmul %7, %9, %cst_5 {dimension_numbers = #tpu.dot_dimension_numbers<[1], [0], [0], [1], [0, 0, 1, 1], [], []>} : vector<8x64xbf16>, vector<64x128xbf16>, vector<8x128xf32> -> vector<8x128xf32>
    %c1 = arith.constant 1 : index
    %c0_6 = arith.constant 0 : index
    %c0_7 = arith.constant 0 : index
    %11 = vector.load %arg2[%c1, %c0_6, %c0_7] : memref<3x64x128xbf16, #tpu.memory_space<vmem>>, vector<1x64x128xbf16>
    %12 = vector.shape_cast %11 : vector<1x64x128xbf16> to vector<64x128xbf16>
    %cst_8 = arith.constant dense<0.000000e+00> : vector<8x128xf32>
    %13 = tpu.matmul %7, %12, %cst_8 {dimension_numbers = #tpu.dot_dimension_numbers<[1], [0], [0], [1], [0, 0, 1, 1], [], []>} : vector<8x64xbf16>, vector<64x128xbf16>, vector<8x128xf32> -> vector<8x128xf32>
    %14 = arith.addf %10, %13 : vector<8x128xf32>
    %c2 = arith.constant 2 : index
    %c0_9 = arith.constant 0 : index
    %c0_10 = arith.constant 0 : index
    %15 = vector.load %arg2[%c2, %c0_9, %c0_10] : memref<3x64x128xbf16, #tpu.memory_space<vmem>>, vector<1x64x128xbf16>
    %16 = vector.shape_cast %15 : vector<1x64x128xbf16> to vector<64x128xbf16>
    %cst_11 = arith.constant dense<0.000000e+00> : vector<8x128xf32>
    %17 = tpu.matmul %7, %16, %cst_11 {dimension_numbers = #tpu.dot_dimension_numbers<[1], [0], [0], [1], [0, 0, 1, 1], [], []>} : vector<8x64xbf16>, vector<64x128xbf16>, vector<8x128xf32> -> vector<8x128xf32>
    %18 = arith.addf %14, %17 : vector<8x128xf32>
    %c0_12 = arith.constant 0 : index
    %c0_13 = arith.constant 0 : index
    %19 = vector.load %arg3[%c0_12, %c0_13] : memref<8x128xf32, #tpu.memory_space<vmem>>, vector<8x128xf32>
    tpu.vector_store %arg3[%c0_12, %c0_13], %18 {strides = array<i32>} : memref<8x128xf32, #tpu.memory_space<vmem>>, vector<8x128xf32>,
    return
  }
  func.func @transform_0(%arg0: i32) -> (i32, i32) {
    %c0_i32 = arith.constant 0 : i32
    %c0_i32_0 = arith.constant 0 : i32
    return %arg0, %c0_i32 : i32, i32
  }
  func.func @transform_1(%arg0: i32) -> (i32, i32, i32) {
    %c0_i32 = arith.constant 0 : i32
    %c0_i32_0 = arith.constant 0 : i32
    %c0_i32_1 = arith.constant 0 : i32
    %c0_i32_2 = arith.constant 0 : i32
    return %c0_i32, %c0_i32_0, %c0_i32_1 : i32, i32, i32
  }
  func.func @transform_2(%arg0: i32) -> (i32, i32) {
    %c0_i32 = arith.constant 0 : i32
    %c0_i32_0 = arith.constant 0 : i32
    return %arg0, %c0_i32 : i32, i32
  }
}

</mosaic_0001>

<llo_original>
// kernel: tpu_custom_call.1
$region0: #{tpu_custom_call.1}
  #allocation0 [shape = 'u32[]', space=smem, size = 0x4, offset = 0x4, fixed_abs, tag = 'smem constant byte address 0x4 - core index']
  #allocation1 [shape = 'u32[144,128]{1,0:T(1,128)}', space=vmem, size = 0x12000, scoped, tag = 'internal scratch']
  %s0 = inlined_call_operand.vmem [shape: s32[16,1], index: 0, kind: input, shape index: {}]
  %s1 = inlined_call_operand.hbm [shape: bf16[3,64,128], index: 1, kind: input, shape index: {}]
  %s2 = inlined_call_operand.hbm [shape: f32[16,128], index: 2, kind: output, shape index: {}]
  %s3 = sld [smem:[#allocation0]]
  $region45: #{tpu_custom_call.1} parent=0
    _
  %s5 = ssub.s32 1, %s3
  %s6 = scalar_select 0, %s5, %s3
  $region1: #{tpu_custom_call.1} parent=0
    #allocation2 [shape = 'u8[49152]{0}', space=vmem, size = 0xc000, scoped, tag = 'input window, operand 1, single buffered']
    #allocation3 [shape = 's32[2]{0}', space=sflag, size = 0x8, scoped, tag = 'scoped memory for tpu_custom_call.1']
    #allocation4 [shape = 's32[2]{0}', space=sflag, size = 0x8, scoped, tag = 'scoped memory for tpu_custom_call.1']
    #allocation5 [shape = 'u8[8192]{0}', space=vmem, size = 0x2000, scoped, tag = 'output window, operand 0']
    %7 = vsyncpa [#allocation3], 0
    %8 = vsyncpa [#allocation4], 0
    %s9 = scalar_lea.sflag [#allocation4], 1
    %10 = vsyncpa %s9, 0
    loop: start=0, step=1, limit=4
    $region2: #{tpu_custom_call.1} parent=1 // loop_pre_header
      _
    $region3: #{tpu_custom_call.1} parent=1 // loop_header
      %s12 = sphi 0, %s16
      %p13 = scmp.ge.s32.totalorder %s12, 4
      %s22 = sphi 0, %s24
      %s25 = sphi 0, %s22
      %s26 = sphi 0, %s25
      %s42 = sphi 0, %s26
      %s46 = sphi 0, %s46
      %s48 = sphi 0, %s46
      %s49 = sphi 0, %s48
      %s63 = sphi 0, %s49
      %s69 = sphi 0, %s71
      %s72 = sphi 0, %s69
      %s73 = sphi 0, %s72
      %s89 = sphi 0, %s73
    $region4: #{tpu_custom_call.1} parent=1 // loop_header_branch
      %15 = sbr.rel (%p13) target = $region8
    $region5: #{tpu_custom_call.1} parent=1 // loop_body
      %s17 = ssub.s32 %s12, 1
      %s18 = ssub.s32 %s12, 2
      %s19 = sadd.s32 %s12, 1
      %s20 = ssub.s32 %s12, %s19
      %p21 = scmp.eq.s32.totalorder %s20, 0
      %s23 = sadd.s32 %s22, 1
      %s24 = scalar_select %p21, %s22, %s23
      %p27 = pneg %p21
      %p28 = scmp.eq.s32.totalorder %s12, 1
      %p29 = por %p27, %p28
      %p30 = scmp.ne.s32.totalorder %s22, %s25
      %p31 = scmp.eq.s32.totalorder %s12, 0
      %p32 = por %p30, %p31
      %p33 = scmp.ne.s32.totalorder %s22, %s25
      %p34 = scmp.eq.s32.totalorder %s17, 1
      %p35 = por %p33, %p34
      %p36 = scmp.ne.s32.totalorder %s25, %s26
      %p37 = scmp.eq.s32.totalorder %s17, 0
      %p38 = por %p36, %p37
      %p39 = scmp.ne.s32.totalorder %s25, %s26
      %p40 = scmp.eq.s32.totalorder %s18, 1
      %p41 = por %p39, %p40
      %p43 = scmp.ne.s32.totalorder %s26, %s42
      %p44 = scmp.eq.s32.totalorder %s18, 0
      %p45 = por %p43, %p44
      %s47 = sadd.s32 %s46, 1
      %p50 = scmp.eq.s32.totalorder %s12, 1
      %p51 = scmp.ne.s32.totalorder %s46, %s48
      %p52 = scmp.eq.s32.totalorder %s12, 0
      %p53 = por %p51, %p52
      %p54 = scmp.ne.s32.totalorder %s46, %s48
      %p55 = scmp.eq.s32.totalorder %s17, 1
      %p56 = por %p54, %p55
      %p57 = scmp.ne.s32.totalorder %s48, %s49
      %p58 = scmp.eq.s32.totalorder %s17, 0
      %p59 = por %p57, %p58
      %p60 = scmp.ne.s32.totalorder %s48, %s49
      %p61 = scmp.eq.s32.totalorder %s18, 1
      %p62 = por %p60, %p61
      %p64 = scmp.ne.s32.totalorder %s49, %s63
      %p65 = scmp.eq.s32.totalorder %s18, 0
      %p66 = por %p64, %p65
      %s67 = ssub.s32 %s12, %s19
      %p68 = scmp.eq.s32.totalorder %s67, 0
      %s70 = sadd.s32 %s69, 1
      %s71 = scalar_select %p68, %s69, %s70
      %p74 = pneg %p68
      %p75 = scmp.eq.s32.totalorder %s12, 1
      %p76 = por %p74, %p75
      %p77 = scmp.ne.s32.totalorder %s69, %s72
      %p78 = scmp.eq.s32.totalorder %s12, 0
      %p79 = por %p77, %p78
      %p80 = scmp.ne.s32.totalorder %s69, %s72
      %p81 = scmp.eq.s32.totalorder %s17, 1
      %p82 = por %p80, %p81
      %p83 = scmp.ne.s32.totalorder %s72, %s73
      %p84 = scmp.eq.s32.totalorder %s17, 0
      %p85 = por %p83, %p84
      %p86 = scmp.ne.s32.totalorder %s72, %s73
      %p87 = scmp.eq.s32.totalorder %s18, 1
      %p88 = por %p86, %p87
      %p90 = scmp.ne.s32.totalorder %s73, %s89
      %p91 = scmp.eq.s32.totalorder %s18, 0
      %p92 = por %p90, %p91
      %p93 = scmp.le.s32.totalorder 1, %s12
      %p94 = scmp.lt.s32.totalorder %s12, 3
      %p95 = pnand %p93, %p94
      %p96 = pneg %p95
      // Predicated region
      $region9: #{tpu_custom_call.1} parent=5 // pred_check
        _
      $region10: #{tpu_custom_call.1} parent=5 // pred_check_branch
        %98 = sbr.rel (%p95) target = $region12
      $region11: #{tpu_custom_call.1} parent=5 // pred_region
        %s99 = ssub.s32 %s12, 1
        // Predicated region
        $region13: #{tpu_custom_call.1} parent=11 // pred_check
          %p100 = pneg %p59
        $region14: #{tpu_custom_call.1} parent=11 // pred_check_branch
          %102 = sbr.rel (%p100) target = $region16
        $region15: #{tpu_custom_call.1} parent=11 // pred_region
          %s104 = ssub.s32 1536, 1536
          %105 = vsyncadd [#allocation3], %s104
          %s106 = sshll.u32 [#allocation2], 4
          %s107 = int_to_ptr.vmem [resolvable:$true] %s106
          %112 = dma.hbm_to_vmem [thread:$0]  %s1, 1536, %s107, [#allocation3], 64, 64, 4
        $region16: #{tpu_custom_call.1} parent=11 // pred_fallthru
          _
      $region12: #{tpu_custom_call.1} parent=5 // pred_fallthru
        _
      %p113 = scmp.lt.s32.totalorder %s12, 2
      // Predicated region
      $region17: #{tpu_custom_call.1} parent=5 // pred_check
        %p114 = pneg %p113
      $region18: #{tpu_custom_call.1} parent=5 // pred_check_branch
        %116 = sbr.rel (%p114) target = $region20
      $region19: #{tpu_custom_call.1} parent=5 // pred_region
        // Predicated region
        $region21: #{tpu_custom_call.1} parent=19 // pred_check
          %p117 = pneg %p32
        $region22: #{tpu_custom_call.1} parent=19 // pred_check_branch
          %119 = sbr.rel (%p117) target = $region24
        $region23: #{tpu_custom_call.1} parent=19 // pred_region
          %p120 = scmp.lt.s32.totalorder %s12, 1
          %s121 = scalar_select %p120, %s12, 1
          %s122 = smul.addr %s121, 8
          %s123 = scalar_lea.vmem %s0, %s122
        $region24: #{tpu_custom_call.1} parent=19 // pred_fallthru
          _
      $region20: #{tpu_custom_call.1} parent=5 // pred_fallthru
        _
      %p124 = scmp.le.s32.totalorder 1, %s12
      %p125 = scmp.lt.s32.totalorder %s12, 3
      %p126 = pnand %p124, %p125
      %p127 = pneg %p126
      // Predicated region
      $region25: #{tpu_custom_call.1} parent=5 // pred_check
        _
      $region26: #{tpu_custom_call.1} parent=5 // pred_check_branch
        %129 = sbr.rel (%p126) target = $region28
      $region27: #{tpu_custom_call.1} parent=5 // pred_region
        %s130 = ssub.s32 %s12, 1
        // Predicated region
        $region29: #{tpu_custom_call.1} parent=27 // pred_check
          %p131 = pneg %p59
        $region30: #{tpu_custom_call.1} parent=27 // pred_check_branch
          %133 = sbr.rel (%p131) target = $region32
        $region31: #{tpu_custom_call.1} parent=27 // pred_region
          %134 = dma.done [#allocation3], 1536
        $region32: #{tpu_custom_call.1} parent=27 // pred_fallthru
          _
        %p135 = scmp.lt.s32.totalorder %s17, 1
        %s136 = scalar_select %p135, %s17, 1
        %s137 = smul.addr %s136, 8
        %s138 = scalar_lea.vmem %s0, %s137
        %p139 = pneg %p38
        %p140 = pneg %p35
        %p141 = pneg %p59
        %p142 = pneg %p56
        %p143 = pneg %p85
        %p144 = pneg %p82
        %s145 = sand.u32 %s72, 1
        %s146 = scalar_lea.sflag [#allocation4], %s145
        %s147 = sand.u32 %s72, 1
        %s148 = smul.addr %s147, 8
        %s149 = scalar_lea.vmem [#allocation5], %s148
        %p150 = scmp.lt.s32.totalorder %s17, 1
        %s151 = scalar_select %p150, %s17, 1
        %s152 = smul.addr %s151, 8
        %s153 = scalar_lea.vmem %s0, %s152
        %v155 = vld [vmem:[%s153] sm:$0xff]
        %v156 = vlaneseq
        %v157 = vand.u32 %v156, 127
        %158 = vset.pattern.permute.xlu0 0
        %159 = vperm.xlu0 %158, %v155
        %v160 = vpop.permute.xlu0 %159
        %vm161 = vcmp.eq.s32.totalorder %v160, %v157
        %v162 = vsel %vm161, 1.0, 0.0
        %v163 = vpack.c.bf16 %v162, %v162
        %v164 = vld [vmem:[#allocation2] sm:$0xf]
        %v165 = vld [vmem:[#allocation2 + $0x4] sm:$0xf]
        %v166 = vld [vmem:[#allocation2 + $0x8] sm:$0xf]
        %v167 = vld [vmem:[#allocation2 + $0xc] sm:$0xf]
        %v168 = vld [vmem:[#allocation2 + $0x10] sm:$0xf]
        %v169 = vld [vmem:[#allocation2 + $0x14] sm:$0xf]
        %v170 = vld [vmem:[#allocation2 + $0x18] sm:$0xf]
        %v171 = vld [vmem:[#allocation2 + $0x1c] sm:$0xf]
        %s172 = scalar_lea.vmem [#allocation2], 32
        %v173 = vld [vmem:[%s172] sm:$0xf]
        %v174 = vld [vmem:[%s172 + $0x4] sm:$0xf]
        %v175 = vld [vmem:[%s172 + $0x8] sm:$0xf]
        %v176 = vld [vmem:[%s172 + $0xc] sm:$0xf]
        %v177 = vld [vmem:[%s172 + $0x10] sm:$0xf]
        %v178 = vld [vmem:[%s172 + $0x14] sm:$0xf]
        %v179 = vld [vmem:[%s172 + $0x18] sm:$0xf]
        %v180 = vld [vmem:[%s172 + $0x1c] sm:$0xf]
        %v189 = vunpack.c.l.b16 %v173
        %v190 = vunpack.c.l.b16 %v174
        %v191 = vunpack.c.l.b16 %v175
        %v192 = vunpack.c.l.b16 %v176
        %v193 = vunpack.c.l.b16 %v177
        %v194 = vunpack.c.l.b16 %v178
        %v195 = vunpack.c.l.b16 %v179
        %v196 = vunpack.c.l.b16 %v180
        %v197 = vpack.c.b16 %v190, %v189
        %v198 = vpack.c.b16 %v192, %v191
        %v199 = vpack.c.b16 %v194, %v193
        %v200 = vpack.c.b16 %v196, %v195
        %vm205 = vcmask 523264
        %v207 = vsel %vm205, %v163, 0
        %209 = vmatprep.subr.bf16.mxu0 0
        %210 = vmatpush1.bf16.msra.mxu0 0
        %211 = vmatprep.subr.bf16.mxu0 0
        %212 = vmatpush1.bf16.msra.mxu0 0
        %213 = vmatprep.subr.bf16.mxu0 0
        %214 = vmatpush1.bf16.msra.mxu0 0
        %215 = vmatprep.subr.bf16.mxu0 0
        %216 = vmatpush1.bf16.msra.mxu0 0
        %217 = vmatprep.subr.bf16.mxu0 0
        %218 = vmatpush1.bf16.msra.mxu0 %v200
        %219 = vmatprep.subr.bf16.mxu0 0
        %220 = vmatpush1.bf16.msra.mxu0 %v199
        %221 = vmatprep.subr.bf16.mxu0 0
        %222 = vmatpush1.bf16.msra.mxu0 %v198
        %223 = vmatprep.subr.bf16.mxu0 0
        %224 = vmatpush1.bf16.msra.mxu0 %v197
        %225 = vmatprep.subr.bf16.mxu0 0
        %226 = vmatpush2.bf16.msra.mxu0 0
        %227 = vmatprep.subr.bf16.mxu0 0
        %228 = vmatpush2.bf16.msra.mxu0 0
        %229 = vmatprep.subr.bf16.mxu0 0
        %230 = vmatpush2.bf16.msra.mxu0 0
        %231 = vmatprep.subr.bf16.mxu0 0
        %232 = vmatpush2.bf16.msra.mxu0 0
        %233 = vmatprep.subr.bf16.mxu0 0
        %234 = vmatpush2.bf16.msra.mxu0 0
        %235 = vmatprep.subr.bf16.mxu0 0
        %236 = vmatpush2.bf16.msra.mxu0 0
        %237 = vmatprep.subr.bf16.mxu0 0
        %238 = vmatpush2.bf16.msra.mxu0 0
        %239 = vmatprep.subr.bf16.mxu0 0
        %240 = vmatpush2.bf16.msra.mxu0 0
        %241 = vmatprep.mubr.bf16.mxu0 0
        %242 = vmatmul.mubr.bf16.gmra.mxu0 %v207
        %v243 = vpop.f32.mrf.mxu0
        %v244 = vadd.f32 0.0, %v243
        %v245 = vpop.f32.mrf.mxu0
        %v246 = vpop.f32.mrf.mxu0
        %v247 = vpop.f32.mrf.mxu0
        %248 = vdwg.mxu0
        %v257 = vunpack.c.l.b16 %v164
        %v258 = vunpack.c.l.b16 %v165
        %v259 = vunpack.c.l.b16 %v166
        %v260 = vunpack.c.l.b16 %v167
        %v261 = vunpack.c.l.b16 %v168
        %v262 = vunpack.c.l.b16 %v169
        %v263 = vunpack.c.l.b16 %v170
        %v264 = vunpack.c.l.b16 %v171
        %v265 = vpack.c.b16 %v258, %v257
        %v266 = vpack.c.b16 %v260, %v259
        %v267 = vpack.c.b16 %v262, %v261
        %v268 = vpack.c.b16 %v264, %v263
        %273 = vmatprep.subr.bf16.mxu0 0
        %274 = vmatpush1.bf16.msra.mxu0 0
        %275 = vmatprep.subr.bf16.mxu0 0
        %276 = vmatpush1.bf16.msra.mxu0 0
        %277 = vmatprep.subr.bf16.mxu0 0
        %278 = vmatpush1.bf16.msra.mxu0 0
        %279 = vmatprep.subr.bf16.mxu0 0
        %280 = vmatpush1.bf16.msra.mxu0 0
        %281 = vmatprep.subr.bf16.mxu0 0
        %282 = vmatpush1.bf16.msra.mxu0 %v268
        %283 = vmatprep.subr.bf16.mxu0 0
        %284 = vmatpush1.bf16.msra.mxu0 %v267
        %285 = vmatprep.subr.bf16.mxu0 0
        %286 = vmatpush1.bf16.msra.mxu0 %v266
        %287 = vmatprep.subr.bf16.mxu0 0
        %288 = vmatpush1.bf16.msra.mxu0 %v265
        %289 = vmatprep.subr.bf16.mxu0 0
        %290 = vmatpush2.bf16.msra.mxu0 0
        %291 = vmatprep.subr.bf16.mxu0 0
        %292 = vmatpush2.bf16.msra.mxu0 0
        %293 = vmatprep.subr.bf16.mxu0 0
        %294 = vmatpush2.bf16.msra.mxu0 0
        %295 = vmatprep.subr.bf16.mxu0 0
        %296 = vmatpush2.bf16.msra.mxu0 0
        %297 = vmatprep.subr.bf16.mxu0 0
        %298 = vmatpush2.bf16.msra.mxu0 0
        %299 = vmatprep.subr.bf16.mxu0 0
        %300 = vmatpush2.bf16.msra.mxu0 0
        %301 = vmatprep.subr.bf16.mxu0 0
        %302 = vmatpush2.bf16.msra.mxu0 0
        %303 = vmatprep.subr.bf16.mxu0 0
        %304 = vmatpush2.bf16.msra.mxu0 0
        %305 = vmatprep.mubr.bf16.mxu0 0
        %306 = vmatmul.mubr.bf16.gmra.mxu0 %v207
        %v307 = vpop.f32.mrf.mxu0
        %v308 = vadd.f32 %v244, %v307
        %v309 = vpop.f32.mrf.mxu0
        %v310 = vpop.f32.mrf.mxu0
        %v311 = vpop.f32.mrf.mxu0
        %312 = vdwg.mxu0
        %s313 = scalar_lea.vmem [#allocation2], 64
        %v314 = vld [vmem:[%s313] sm:$0xf]
        %v315 = vld [vmem:[%s313 + $0x4] sm:$0xf]
        %v316 = vld [vmem:[%s313 + $0x8] sm:$0xf]
        %v317 = vld [vmem:[%s313 + $0xc] sm:$0xf]
        %v318 = vld [vmem:[%s313 + $0x10] sm:$0xf]
        %v319 = vld [vmem:[%s313 + $0x14] sm:$0xf]
        %v320 = vld [vmem:[%s313 + $0x18] sm:$0xf]
        %v321 = vld [vmem:[%s313 + $0x1c] sm:$0xf]
        %v330 = vunpack.c.l.b16 %v314
        %v331 = vunpack.c.l.b16 %v315
        %v332 = vunpack.c.l.b16 %v316
        %v333 = vunpack.c.l.b16 %v317
        %v334 = vunpack.c.l.b16 %v318
        %v335 = vunpack.c.l.b16 %v319
        %v336 = vunpack.c.l.b16 %v320
        %v337 = vunpack.c.l.b16 %v321
        %v338 = vpack.c.b16 %v331, %v330
        %v339 = vpack.c.b16 %v333, %v332
        %v340 = vpack.c.b16 %v335, %v334
        %v341 = vpack.c.b16 %v337, %v336
        %346 = vmatprep.subr.bf16.mxu0 0
        %347 = vmatpush1.bf16.msra.mxu0 0
        %348 = vmatprep.subr.bf16.mxu0 0
        %349 = vmatpush1.bf16.msra.mxu0 0
        %350 = vmatprep.subr.bf16.mxu0 0
        %351 = vmatpush1.bf16.msra.mxu0 0
        %352 = vmatprep.subr.bf16.mxu0 0
        %353 = vmatpush1.bf16.msra.mxu0 0
        %354 = vmatprep.subr.bf16.mxu0 0
        %355 = vmatpush1.bf16.msra.mxu0 %v341
        %356 = vmatprep.subr.bf16.mxu0 0
        %357 = vmatpush1.bf16.msra.mxu0 %v340
        %358 = vmatprep.subr.bf16.mxu0 0
        %359 = vmatpush1.bf16.msra.mxu0 %v339
        %360 = vmatprep.subr.bf16.mxu0 0
        %361 = vmatpush1.bf16.msra.mxu0 %v338
        %362 = vmatprep.subr.bf16.mxu0 0
        %363 = vmatpush2.bf16.msra.mxu0 0
        %364 = vmatprep.subr.bf16.mxu0 0
        %365 = vmatpush2.bf16.msra.mxu0 0
        %366 = vmatprep.subr.bf16.mxu0 0
        %367 = vmatpush2.bf16.msra.mxu0 0
        %368 = vmatprep.subr.bf16.mxu0 0
        %369 = vmatpush2.bf16.msra.mxu0 0
        %370 = vmatprep.subr.bf16.mxu0 0
        %371 = vmatpush2.bf16.msra.mxu0 0
        %372 = vmatprep.subr.bf16.mxu0 0
        %373 = vmatpush2.bf16.msra.mxu0 0
        %374 = vmatprep.subr.bf16.mxu0 0
        %375 = vmatpush2.bf16.msra.mxu0 0
        %376 = vmatprep.subr.bf16.mxu0 0
        %377 = vmatpush2.bf16.msra.mxu0 0
        %378 = vmatprep.mubr.bf16.mxu0 0
        %379 = vmatmul.mubr.bf16.gmra.mxu0 %v207
        %v380 = vpop.f32.mrf.mxu0
        %v381 = vadd.f32 0.0, %v380
        %v382 = vpop.f32.mrf.mxu0
        %v383 = vpop.f32.mrf.mxu0
        %v384 = vpop.f32.mrf.mxu0
        %385 = vdwg.mxu0
        %v386 = vadd.f32 %v308, %v381
        %387 = vst [vmem:[%s149] sm:$0xff] %v386
        %s388 = sand.u32 %s72, 1
        %s389 = scalar_lea.sflag [#allocation4], %s388
        %s390 = sand.u32 %s72, 1
        %s391 = smul.addr %s390, 8
        %s392 = scalar_lea.vmem [#allocation5], %s391
        // Predicated region
        $region33: #{tpu_custom_call.1} parent=27 // pred_check
          %p393 = pneg %p82
        $region34: #{tpu_custom_call.1} parent=27 // pred_check_branch
          %395 = sbr.rel (%p393) target = $region36
        $region35: #{tpu_custom_call.1} parent=27 // pred_region
          %s397 = ssub.s32 128, 128
          %398 = vsyncadd %s389, %s397
          %s399 = smul.addr %s17, 128
          %s400 = scalar_lea.hbm %s2, %s399
          %s402 = sshll.u32 %s392, 4
          %s403 = int_to_ptr.vmem [resolvable:$true] %s402
          %405 = dma.vmem_to_hbm [thread:$0]  %s403, 128, %s400, %s389
        $region36: #{tpu_custom_call.1} parent=27 // pred_fallthru
          _
      $region28: #{tpu_custom_call.1} parent=5 // pred_fallthru
        _
      %p406 = scmp.le.s32.totalorder 2, %s12
      // Predicated region
      $region37: #{tpu_custom_call.1} parent=5 // pred_check
        %p407 = pneg %p406
      $region38: #{tpu_custom_call.1} parent=5 // pred_check_branch
        %409 = sbr.rel (%p407) target = $region40
      $region39: #{tpu_custom_call.1} parent=5 // pred_region
        %s410 = ssub.s32 %s12, 2
        // Predicated region
        $region41: #{tpu_custom_call.1} parent=39 // pred_check
          %p411 = pneg %p88
        $region42: #{tpu_custom_call.1} parent=39 // pred_check_branch
          %413 = sbr.rel (%p411) target = $region44
        $region43: #{tpu_custom_call.1} parent=39 // pred_region
          %s414 = sand.u32 %s73, 1
          %s415 = scalar_lea.sflag [#allocation4], %s414
          %s416 = sand.u32 %s73, 1
          %s417 = smul.addr %s416, 8
          %s418 = scalar_lea.vmem [#allocation5], %s417
          %419 = dma.done %s415, 128
        $region44: #{tpu_custom_call.1} parent=39 // pred_fallthru
          _
      $region40: #{tpu_custom_call.1} parent=5 // pred_fallthru
        _
    $region6: #{tpu_custom_call.1} parent=1 // loop_footer
      %s16 = sadd.s32 1, %s12
    $region7: #{tpu_custom_call.1} parent=1 // loop_footer_branch
      %11 = sbr.rel target = $region3
    $region8: #{tpu_custom_call.1} parent=1 // loop_exit
      _
    %420 = vsyncpa [#allocation3], 1
    %s421 = scalar_lea.sflag [#allocation3], 1
    %422 = vsyncpa %s421, 1
    %423 = vsyncpa [#allocation4], 1
    %s424 = scalar_lea.sflag [#allocation4], 1
    %425 = vsyncpa %s424, 1

</llo_original>
